<compile_context>
chip_gen: v7x
topology: tpu7x:2x2x1
jax: 0.10.0
libtpu: 0.0.40
codegen_flags: <defaults>
</compile_context>

<pallas_src>
import functools

import jax
import jax.numpy as jnp
from jax.experimental import pallas as pl
from jax.experimental.pallas import tpu as pltpu


# ---------------------------------------------------------------------------
# tiling helpers
# ---------------------------------------------------------------------------

def _pick_tile(dim, target, align):
    """Largest multiple of `align` <= target that divides dim (else full dim)."""
    if dim <= target:
        return dim
    t = (target // align) * align
    while t >= align:
        if dim % t == 0:
            return t
        t -= align
    return dim


# ---------------------------------------------------------------------------
# fused tiled linear:  out = [residual +] [gate_out *] act((x [* gate_in]) @ W + b)
# ---------------------------------------------------------------------------

def _matmul_kernel(*refs, nk, has_bias, has_gin, has_gout, has_res, activation):
    it = iter(refs)
    x_ref = next(it)
    gin_ref = next(it) if has_gin else None
    w_ref = next(it)
    b_ref = next(it) if has_bias else None
    gout_ref = next(it) if has_gout else None
    res_ref = next(it) if has_res else None
    o_ref = next(it)
    acc_ref = next(it)

    k = pl.program_id(2)

    @pl.when(k == 0)
    def _():
        acc_ref[...] = jnp.zeros_like(acc_ref)

    x = x_ref[...]
    if has_gin:
        x = x * gin_ref[...]
    acc_ref[...] += jnp.dot(x, w_ref[...], preferred_element_type=jnp.float32)

    @pl.when(k == nk - 1)
    def _():
        y = acc_ref[...]
        if has_bias:
            y = y + b_ref[...].astype(jnp.float32)
        if activation == "relu":
            y = jnp.maximum(y, 0.0)
        elif activation == "sigmoid":
            y = jax.nn.sigmoid(y)
        if has_gout:
            y = y * gout_ref[...].astype(jnp.float32)
        if has_res:
            y = y + res_ref[...].astype(jnp.float32)
        o_ref[...] = y.astype(o_ref.dtype)


def pallas_linear(x, w, b=None, activation=None, gate_in=None, gate_out=None,
                  residual=None, out_dtype=jnp.float32):
    """Tiled fused linear.  x: [..., K], w: [K, N]."""
    lead = x.shape[:-1]
    K = x.shape[-1]
    N = w.shape[-1]
    x2 = x.reshape(-1, K).astype(jnp.bfloat16)
    M = x2.shape[0]
    w2 = w.astype(jnp.bfloat16)

    tm = _pick_tile(M, 256, 8)
    tn = _pick_tile(N, 256, 128)
    tk = _pick_tile(K, 512, 128)
    nk = K // tk

    in_specs = [pl.BlockSpec((tm, tk), lambda i, j, k: (i, k))]
    args = [x2]
    if gate_in is not None:
        in_specs.append(pl.BlockSpec((tm, tk), lambda i, j, k: (i, k)))
        args.append(gate_in.reshape(M, K).astype(jnp.bfloat16))
    in_specs.append(pl.BlockSpec((tk, tn), lambda i, j, k: (k, j)))
    args.append(w2)
    if b is not None:
        in_specs.append(pl.BlockSpec((1, tn), lambda i, j, k: (0, j)))
        args.append(b.reshape(1, N).astype(jnp.float32))
    if gate_out is not None:
        in_specs.append(pl.BlockSpec((tm, tn), lambda i, j, k: (i, j)))
        args.append(gate_out.reshape(M, N))
    if residual is not None:
        in_specs.append(pl.BlockSpec((tm, tn), lambda i, j, k: (i, j)))
        args.append(residual.reshape(M, N))

    kernel = functools.partial(
        _matmul_kernel, nk=nk, has_bias=b is not None, has_gin=gate_in is not None,
        has_gout=gate_out is not None, has_res=residual is not None,
        activation=activation)

    out = pl.pallas_call(
        kernel,
        out_shape=jax.ShapeDtypeStruct((M, N), out_dtype),
        grid=(M // tm, N // tn, nk),
        in_specs=in_specs,
        out_specs=pl.BlockSpec((tm, tn), lambda i, j, k: (i, j)),
        scratch_shapes=[pltpu.VMEM((tm, tn), jnp.float32)],
        compiler_params=pltpu.CompilerParams(
            dimension_semantics=("parallel", "parallel", "arbitrary")),
    )(*args)
    return out.reshape(*lead, N)


# ---------------------------------------------------------------------------
# row-tiled layernorm
# ---------------------------------------------------------------------------

def _layernorm_kernel(x_ref, g_ref, b_ref, o_ref, *, eps):
    x = x_ref[...].astype(jnp.float32)
    mu = jnp.mean(x, axis=-1, keepdims=True)
    var = jnp.mean(jnp.square(x - mu), axis=-1, keepdims=True)
    y = (x - mu) * jax.lax.rsqrt(var + eps)
    o_ref[...] = (y * g_ref[...] + b_ref[...]).astype(o_ref.dtype)


def pallas_layernorm(x, gamma, beta, eps=1e-5, out_dtype=None):
    lead = x.shape[:-1]
    D = x.shape[-1]
    x2 = x.reshape(-1, D)
    M = x2.shape[0]
    tm = _pick_tile(M, 1024, 8)
    out = pl.pallas_call(
        functools.partial(_layernorm_kernel, eps=eps),
        out_shape=jax.ShapeDtypeStruct((M, D), out_dtype or x.dtype),
        grid=(M // tm,),
        in_specs=[pl.BlockSpec((tm, D), lambda i: (i, 0)),
                  pl.BlockSpec((1, D), lambda i: (0, 0)),
                  pl.BlockSpec((1, D), lambda i: (0, 0))],
        out_specs=pl.BlockSpec((tm, D), lambda i: (i, 0)),
        compiler_params=pltpu.CompilerParams(dimension_semantics=("parallel",)),
    )(x2, gamma.reshape(1, D).astype(jnp.float32),
      beta.reshape(1, D).astype(jnp.float32))
    return out.reshape(*lead, D)


# ---------------------------------------------------------------------------
# multi-head attention: all heads of one (batch, row) per grid step,
# optional per-(batch, head) additive bias selected by BlockSpec (no broadcast).
# ---------------------------------------------------------------------------

def _mha_kernel(*refs, n_head, scale, has_bias):
    if has_bias:
        q_ref, k_ref, v_ref, b_ref, o_ref = refs
    else:
        q_ref, k_ref, v_ref, o_ref = refs
        b_ref = None
    D = q_ref.shape[3]
    c = D // n_head
    for h in range(n_head):
        sl = slice(h * c, (h + 1) * c)
        qh = q_ref[0, 0, :, sl]                       # [L, c] bf16
        kh = k_ref[0, 0, :, sl]
        vh = v_ref[0, 0, :, sl]
        logits = jax.lax.dot_general(
            qh, kh, (((1,), (1,)), ((), ())),
            preferred_element_type=jnp.float32) * scale          # [L, L] f32
        if has_bias:
            logits = logits + b_ref[0, h].astype(jnp.float32)
        m = jnp.max(logits, axis=-1, keepdims=True)
        p = jnp.exp(logits - m)
        denom = jnp.sum(p, axis=-1, keepdims=True)
        p = p * pl.reciprocal(denom, approx=True)
        oh = jnp.dot(p.astype(vh.dtype), vh, preferred_element_type=jnp.float32)
        o_ref[0, 0, :, sl] = oh.astype(o_ref.dtype)


def pallas_mha(q, k, v, bias, scale, n_head):
    """q,k,v: [B, R, L, D] (bf16);  bias: [B, H, L, L] (shared over R) or None."""
    B, R, L, D = q.shape
    in_specs = [pl.BlockSpec((1, 1, L, D), lambda b, r: (b, r, 0, 0))] * 3
    args = [q, k, v]
    if bias is not None:
        H = bias.shape[1]
        in_specs = in_specs + [pl.BlockSpec((1, H, L, L), lambda b, r: (b, 0, 0, 0))]
        args.append(bias)
    return pl.pallas_call(
        functools.partial(_mha_kernel, n_head=n_head, scale=scale,
                          has_bias=bias is not None),
        out_shape=jax.ShapeDtypeStruct((B, R, L, D), q.dtype),
        grid=(B, R),
        in_specs=in_specs,
        out_specs=pl.BlockSpec((1, 1, L, D), lambda b, r: (b, r, 0, 0)),
        compiler_params=pltpu.CompilerParams(
            dimension_semantics=("parallel", "parallel")),
    )(*args)


# ---------------------------------------------------------------------------
# batched-channel triangle matmul:  out[c, i, j] = sum_k L[c, i, k] * R[c, j, k]
# ---------------------------------------------------------------------------

def _tri_bmm_kernel(l_ref, r_ref, o_ref):
    o_ref[...] = jax.lax.dot_general(
        l_ref[...], r_ref[...],
        (((2,), (2,)), ((0,), (0,))),      # contract k (last), batch c (first)
        preferred_element_type=jnp.float32).astype(o_ref.dtype)


def pallas_tri_bmm(l, r, out_dtype=jnp.bfloat16):
    G, N, _ = l.shape
    cb = _pick_tile(G, 8, 1)
    return pl.pallas_call(
        _tri_bmm_kernel,
        out_shape=jax.ShapeDtypeStruct((G, N, N), out_dtype),
        grid=(G // cb,),
        in_specs=[pl.BlockSpec((cb, N, N), lambda c: (c, 0, 0))] * 2,
        out_specs=pl.BlockSpec((cb, N, N), lambda c: (c, 0, 0)),
        compiler_params=pltpu.CompilerParams(dimension_semantics=("parallel",)),
    )(l, r)


# ---------------------------------------------------------------------------
# fused OutProductMean:
#   out[b,i,j,f] = pair[b,i,j,f] + o_b[f]
#                + (1/S) * sum_{s,d,e} a[b,s,i,d] * bp[b,s,j,e] * o_w[d*P+e, f]
# computed without ever materializing the [N, N, P*P] intermediate.
# ---------------------------------------------------------------------------

def _opm_kernel(a_ref, b_ref, w_ref, bias_ref, res_ref, o_ref, acc_ref,
                *, n_proj, ti, inv_s):
    # a_ref: [1, ti, S, P] bf16   (a transposed to [B, N, S, P])
    # b_ref: [1, P, S, N]  bf16   (bp transposed to [B, P(e), S, N])
    # w_ref: [P(e), P(d), F] bf16
    # bias_ref: [1, F] f32 ; res_ref/o_ref: [1, ti, N, F] ; acc_ref: [N, F] f32
    for il in range(ti):
        a_i = a_ref[0, il]                              # [S, P] bf16
        acc_ref[...] = jnp.zeros_like(acc_ref)

        def body(e, carry):
            u = jnp.dot(a_i, w_ref[e],
                        preferred_element_type=jnp.float32)        # [S, F]
            b_e = b_ref[0, e]                                       # [S, N]
            acc_ref[...] += jax.lax.dot_general(
                b_e, u.astype(jnp.bfloat16), (((0,), (0,)), ((), ())),
                preferred_element_type=jnp.float32)                 # [N, F]
            return carry

        jax.lax.fori_loop(0, n_proj, body, 0)
        y = acc_ref[...] * inv_s + bias_ref[...].astype(jnp.float32)
        y = y + res_ref[0, il].astype(jnp.float32)
        o_ref[0, il] = y.astype(o_ref.dtype)


# ---------------------------------------------------------------------------
# Parameter init (deterministic, synthetic)
# ---------------------------------------------------------------------------

class KeyGen:
    def __init__(self, seed):
        self._key = jax.random.PRNGKey(seed)
        self._i = 0

    def __call__(self):
        self._i += 1
        return jax.random.fold_in(self._key, self._i)


def _w(kg, shape, std=0.02):
    return std * jax.random.normal(kg(), shape, jnp.float32)


def init_msa_row(kg, d_node, d_pair, n_head):
    c = d_node // n_head
    return dict(
        n_head=n_head,
        ln_m_g=jnp.ones((d_node,)), ln_m_b=jnp.zeros((d_node,)),
        ln_z_g=jnp.ones((d_pair,)), ln_z_b=jnp.zeros((d_pair,)),
        b_w=_w(kg, (d_pair, n_head), 1.0 / (d_pair ** 0.5)),
        q_w=_w(kg, (d_node, n_head * c)),
        k_w=_w(kg, (d_node, n_head * c)),
        v_w=_w(kg, (d_node, n_head * c)),
        gate_w=_w(kg, (d_node, n_head * c)), gate_b=jnp.ones((n_head * c,)),
        o_w=_w(kg, (n_head * c, d_node)), o_b=jnp.zeros((d_node,)),
    )


def init_msa_col(kg, d_node, n_head):
    c = d_node // n_head
    return dict(
        n_head=n_head,
        ln_g=jnp.ones((d_node,)), ln_b=jnp.zeros((d_node,)),
        q_w=_w(kg, (d_node, n_head * c)),
        k_w=_w(kg, (d_node, n_head * c)),
        v_w=_w(kg, (d_node, n_head * c)),
        gate_w=_w(kg, (d_node, n_head * c)), gate_b=jnp.ones((n_head * c,)),
        o_w=_w(kg, (n_head * c, d_node)), o_b=jnp.zeros((d_node,)),
    )


def init_transition(kg, d, factor=4):
    h = d * factor
    return dict(
        ln_g=jnp.ones((d,)), ln_b=jnp.zeros((d,)),
        w1=_w(kg, (d, h)), b1=jnp.zeros((h,)),
        w2=_w(kg, (h, d)), b2=jnp.zeros((d,)),
    )


def init_opm(kg, d_node, d_pair, n_proj):
    return dict(
        n_proj=n_proj,
        ln_g=jnp.ones((d_node,)), ln_b=jnp.zeros((d_node,)),
        a_w=_w(kg, (d_node, n_proj)), a_b=jnp.zeros((n_proj,)),
        b_w=_w(kg, (d_node, n_proj)), b_b=jnp.zeros((n_proj,)),
        o_w=_w(kg, (n_proj * n_proj, d_pair)), o_b=jnp.zeros((d_pair,)),
    )


def init_tri_mul(kg, d_pair):
    return dict(
        ln1_g=jnp.ones((d_pair,)), ln1_b=jnp.zeros((d_pair,)),
        lp_w=_w(kg, (d_pair, d_pair)), lp_b=jnp.zeros((d_pair,)),
        rp_w=_w(kg, (d_pair, d_pair)), rp_b=jnp.zeros((d_pair,)),
        lg_w=_w(kg, (d_pair, d_pair)), lg_b=jnp.ones((d_pair,)),
        rg_w=_w(kg, (d_pair, d_pair)), rg_b=jnp.ones((d_pair,)),
        og_w=_w(kg, (d_pair, d_pair)), og_b=jnp.ones((d_pair,)),
        ln2_g=jnp.ones((d_pair,)), ln2_b=jnp.zeros((d_pair,)),
        op_w=_w(kg, (d_pair, d_pair)), op_b=jnp.zeros((d_pair,)),
    )


def init_tri_att(kg, d_pair, n_head):
    c = d_pair // n_head
    return dict(
        n_head=n_head,
        ln_g=jnp.ones((d_pair,)), ln_b=jnp.zeros((d_pair,)),
        b_w=_w(kg, (d_pair, n_head), 1.0 / (d_pair ** 0.5)),
        q_w=_w(kg, (d_pair, n_head * c)),
        k_w=_w(kg, (d_pair, n_head * c)),
        v_w=_w(kg, (d_pair, n_head * c)),
        gate_w=_w(kg, (d_pair, n_head * c)), gate_b=jnp.ones((n_head * c,)),
        o_w=_w(kg, (n_head * c, d_pair)), o_b=jnp.zeros((d_pair,)),
    )


def init_evoformer_params(seed, d_node, d_pair, n_head_node=4, n_head_pair=4,
                          n_feat_proj=32):
    kg = KeyGen(seed)
    return dict(
        msa_row=init_msa_row(kg, d_node, d_pair, n_head_node),
        msa_col=init_msa_col(kg, d_node, n_head_node),
        msa_trans=init_transition(kg, d_node, 4),
        opm=init_opm(kg, d_node, d_pair, n_feat_proj),
        tri_mul_out=init_tri_mul(kg, d_pair),
        tri_mul_in=init_tri_mul(kg, d_pair),
        tri_att_start=init_tri_att(kg, d_pair, n_head_pair),
        tri_att_end=init_tri_att(kg, d_pair, n_head_pair),
        pair_trans=init_transition(kg, d_pair, 4),
    )


# ---------------------------------------------------------------------------
# Evoformer sub-blocks (forward)
# ---------------------------------------------------------------------------

def msa_row_attention_with_pair_bias(p, node, pair):
    B, S, N, D = node.shape
    H = p["n_head"]
    c = D // H
    m = pallas_layernorm(node, p["ln_m_g"], p["ln_m_b"], out_dtype=jnp.bfloat16)
    z = pallas_layernorm(pair, p["ln_z_g"], p["ln_z_b"], out_dtype=jnp.bfloat16)

    bias = pallas_linear(z, p["b_w"])                          # [B, N, N, H] f32
    bias = jnp.transpose(bias, (0, 3, 1, 2))                   # [B, H, N, N]

    q = pallas_linear(m, p["q_w"], out_dtype=jnp.bfloat16)     # [B, S, N, D]
    k = pallas_linear(m, p["k_w"], out_dtype=jnp.bfloat16)
    v = pallas_linear(m, p["v_w"], out_dtype=jnp.bfloat16)
    gate = pallas_linear(m, p["gate_w"], p["gate_b"], activation="sigmoid",
                         out_dtype=jnp.bfloat16)

    o = pallas_mha(q, k, v, bias, scale=1.0 / (c ** 0.5), n_head=H)   # [B,S,N,D]
    # fused: (o * gate) @ o_w + o_b + node
    return pallas_linear(o, p["o_w"], p["o_b"], gate_in=gate, residual=node,
                         out_dtype=jnp.float32)


def msa_column_attention(p, node):
    B, S, N, D = node.shape
    H = p["n_head"]
    c = D // H
    m = pallas_layernorm(node, p["ln_g"], p["ln_b"], out_dtype=jnp.bfloat16)
    mt = jnp.transpose(m, (0, 2, 1, 3))                        # [B, N, S, D]

    q = pallas_linear(mt, p["q_w"], out_dtype=jnp.bfloat16)
    k = pallas_linear(mt, p["k_w"], out_dtype=jnp.bfloat16)
    v = pallas_linear(mt, p["v_w"], out_dtype=jnp.bfloat16)
    gate = pallas_linear(mt, p["gate_w"], p["gate_b"], activation="sigmoid",
                         out_dtype=jnp.bfloat16)

    # attend over MSA rows (S) per residue column; no bias tensor at all
    o_t = pallas_mha(q, k, v, None, scale=1.0 / (c ** 0.5), n_head=H)  # [B,N,S,D]
    proj_t = pallas_linear(o_t, p["o_w"], p["o_b"], gate_in=gate,
                           out_dtype=jnp.float32)
    return node + jnp.transpose(proj_t, (0, 2, 1, 3))


def transition(p, x):
    y = pallas_layernorm(x, p["ln_g"], p["ln_b"], out_dtype=jnp.bfloat16)
    h = pallas_linear(y, p["w1"], p["b1"], activation="relu",
                      out_dtype=jnp.bfloat16)
    return pallas_linear(h, p["w2"], p["b2"], residual=x, out_dtype=jnp.float32)


def out_product_mean(p, node, pair):
    """Returns pair + OutProductMean(node), fused."""
    B, S, N, D = node.shape
    P = p["n_proj"]
    F = pair.shape[-1]
    m = pallas_layernorm(node, p["ln_g"], p["ln_b"], out_dtype=jnp.bfloat16)
    a = pallas_linear(m, p["a_w"], p["a_b"], out_dtype=jnp.bfloat16)   # [B,S,N,P]
    bp = pallas_linear(m, p["b_w"], p["b_b"], out_dtype=jnp.bfloat16)  # [B,S,N,P]

    a_t = jnp.transpose(a, (0, 2, 1, 3))                   # [B, N, S, P]
    b_t = jnp.transpose(bp, (0, 3, 1, 2))                  # [B, P(e), S, N]
    # o_w rows are indexed by (d, e); re-arrange to [e, d, F] for the kernel
    w_r = jnp.transpose(p["o_w"].reshape(P, P, F), (1, 0, 2)).astype(jnp.bfloat16)
    bias = p["o_b"].reshape(1, F).astype(jnp.float32)

    ti = _pick_tile(N, 8, 1)
    return pl.pallas_call(
        functools.partial(_opm_kernel, n_proj=P, ti=ti, inv_s=1.0 / S),
        out_shape=jax.ShapeDtypeStruct((B, N, N, F), pair.dtype),
        grid=(B, N // ti),
        in_specs=[
            pl.BlockSpec((1, ti, S, P), lambda b, i: (b, i, 0, 0)),
            pl.BlockSpec((1, P, S, N), lambda b, i: (b, 0, 0, 0)),
            pl.BlockSpec((P, P, F), lambda b, i: (0, 0, 0)),
            pl.BlockSpec((1, F), lambda b, i: (0, 0)),
            pl.BlockSpec((1, ti, N, F), lambda b, i: (b, i, 0, 0)),
        ],
        out_specs=pl.BlockSpec((1, ti, N, F), lambda b, i: (b, i, 0, 0)),
        scratch_shapes=[pltpu.VMEM((N, F), jnp.float32)],
        compiler_params=pltpu.CompilerParams(
            dimension_semantics=("parallel", "parallel")),
    )(a_t, b_t, w_r, bias, pair)


def triangle_multiplication(p, pair, outgoing=True):
    B, N, _, C = pair.shape
    z = pallas_layernorm(pair, p["ln1_g"], p["ln1_b"], out_dtype=jnp.bfloat16)

    lg = pallas_linear(z, p["lg_w"], p["lg_b"], activation="sigmoid",
                       out_dtype=jnp.bfloat16)
    left = pallas_linear(z, p["lp_w"], p["lp_b"], gate_out=lg,
                         out_dtype=jnp.bfloat16)
    rg = pallas_linear(z, p["rg_w"], p["rg_b"], activation="sigmoid",
                       out_dtype=jnp.bfloat16)
    right = pallas_linear(z, p["rp_w"], p["rp_b"], gate_out=rg,
                          out_dtype=jnp.bfloat16)
    g = pallas_linear(z, p["og_w"], p["og_b"], activation="sigmoid",
                      out_dtype=jnp.bfloat16)

    # channel-major layout so channels batch across the MXU (no Python batch loop)
    perm = (0, 3, 1, 2) if outgoing else (0, 3, 2, 1)
    l_cm = jnp.transpose(left, perm).reshape(B * C, N, N)
    r_cm = jnp.transpose(right, perm).reshape(B * C, N, N)
    ab_cm = pallas_tri_bmm(l_cm, r_cm, out_dtype=jnp.bfloat16)      # [B*C, N, N]
    ab = jnp.transpose(ab_cm.reshape(B, C, N, N), (0, 2, 3, 1))     # [B, N, N, C]

    ab = pallas_layernorm(ab, p["ln2_g"], p["ln2_b"], out_dtype=jnp.bfloat16)
    # fused: pair + (ab @ op_w + op_b) * g
    return pallas_linear(ab, p["op_w"], p["op_b"], gate_out=g, residual=pair,
                         out_dtype=jnp.float32)


def triangle_attention(p, pair, starting=True):
    x = pair if starting else jnp.transpose(pair, (0, 2, 1, 3))
    B, N, _, C = x.shape
    H = p["n_head"]
    c = C // H
    z = pallas_layernorm(x, p["ln_g"], p["ln_b"], out_dtype=jnp.bfloat16)

    bias = pallas_linear(z, p["b_w"])                          # [B, N, N, H] f32
    bias = jnp.transpose(bias, (0, 3, 1, 2))                   # [B, H, N, N]

    q = pallas_linear(z, p["q_w"], out_dtype=jnp.bfloat16)
    k = pallas_linear(z, p["k_w"], out_dtype=jnp.bfloat16)
    v = pallas_linear(z, p["v_w"], out_dtype=jnp.bfloat16)
    gate = pallas_linear(z, p["gate_w"], p["gate_b"], activation="sigmoid",
                         out_dtype=jnp.bfloat16)

    o = pallas_mha(q, k, v, bias, scale=1.0 / (c ** 0.5), n_head=H)  # [B,N,N,C]
    out = pallas_linear(o, p["o_w"], p["o_b"], gate_in=gate, residual=x,
                        out_dtype=jnp.float32)
    return out if starting else jnp.transpose(out, (0, 2, 1, 3))


def evoformer_forward(params, node, pair):
    # MSAStack
    node = msa_row_attention_with_pair_bias(params["msa_row"], node, pair)
    node = msa_column_attention(params["msa_col"], node)
    node = transition(params["msa_trans"], node)
    # Communication: pair = pair + OutProductMean(node)   (residual fused in kernel)
    pair = out_product_mean(params["opm"], node, pair)
    # PairStack
    pair = triangle_multiplication(params["tri_mul_out"], pair, outgoing=True)
    pair = triangle_multiplication(params["tri_mul_in"], pair, outgoing=False)
    pair = triangle_attention(params["tri_att_start"], pair, starting=True)
    pair = triangle_attention(params["tri_att_end"], pair, starting=False)
    pair = transition(params["pair_trans"], pair)
    return node, pair


# ---------------------------------------------------------------------------

if __name__ == "__main__":
    B, S, N = 1, 4, 8          # batch, MSA rows, residues
    d_node, d_pair = 32, 16

    key = jax.random.PRNGKey(0)
    kn, kp = jax.random.split(key)
    node = jax.random.normal(kn, (B, S, N, d_node), jnp.float32)
    pair = jax.random.normal(kp, (B, N, N, d_pair), jnp.float32)

    params = init_evoformer_params(seed=0, d_node=d_node, d_pair=d_pair)

    node_out, pair_out = evoformer_forward(params, node, pair)
    jax.block_until_ready((node_out, pair_out))

    assert node_out.shape == (B, S, N, d_node)
    assert pair_out.shape == (B, N, N, d_pair)
    assert bool(jnp.all(jnp.isfinite(node_out))) and bool(jnp.all(jnp.isfinite(pair_out)))
    print("KERNEL_OK")
</pallas_src>

<mosaic_0001>
module attributes {stable_mosaic.version = 11 : i64} {
  func.func @_layernorm_kernel(%arg0: i32, %arg1: memref<32x32xf32, #tpu.memory_space<vmem>>, %arg2: memref<1x32xf32, #tpu.memory_space<vmem>>, %arg3: memref<1x32xf32, #tpu.memory_space<vmem>>, %arg4: memref<32x32xbf16, #tpu.memory_space<vmem>>) attributes {dimension_semantics = [#tpu.dimension_semantics<parallel>], iteration_bounds = array<i64: 1>, scalar_prefetch = 0 : i64, scratch_operands = 0 : i64, tpu.core_type = #tpu.core_type<tc>, window_params = [{transform_indices = @transform_0, window_bounds = array<i64: 32, 32>}, {pipeline_mode = #tpu.pipeline_mode<synchronous>, transform_indices = @transform_1, window_bounds = array<i64: 1, 32>}, {pipeline_mode = #tpu.pipeline_mode<synchronous>, transform_indices = @transform_2, window_bounds = array<i64: 1, 32>}, {transform_indices = @transform_3, window_bounds = array<i64: 32, 32>}]} {
    %c0 = arith.constant 0 : index
    %c0_0 = arith.constant 0 : index
    %0 = vector.load %arg1[%c0, %c0_0] : memref<32x32xf32, #tpu.memory_space<vmem>>, vector<32x32xf32>
    %cst = arith.constant dense<0.000000e+00> : vector<32xf32>
    %1 = vector.multi_reduction <add>, %0, %cst [1] : vector<32x32xf32> to vector<32xf32>
    %2 = vector.shape_cast %1 : vector<32xf32> to vector<32x1xf32>
    %cst_1 = arith.constant 3.200000e+01 : f32
    %3 = vector.broadcast %cst_1 : f32 to vector<32x1xf32>
    %4 = arith.divf %2, %3 : vector<32x1xf32>
    %5 = vector.broadcast %4 : vector<32x1xf32> to vector<32x32xf32>
    %6 = arith.subf %0, %5 : vector<32x32xf32>
    %7 = arith.mulf %6, %6 : vector<32x32xf32>
    %cst_2 = arith.constant dense<0.000000e+00> : vector<32xf32>
    %8 = vector.multi_reduction <add>, %7, %cst_2 [1] : vector<32x32xf32> to vector<32xf32>
    %9 = vector.shape_cast %8 : vector<32xf32> to vector<32x1xf32>
    %cst_3 = arith.constant 3.200000e+01 : f32
    %10 = vector.broadcast %cst_3 : f32 to vector<32x1xf32>
    %11 = arith.divf %9, %10 : vector<32x1xf32>
    %12 = vector.broadcast %4 : vector<32x1xf32> to vector<32x32xf32>
    %13 = arith.subf %0, %12 : vector<32x32xf32>
    %cst_4 = arith.constant 9.99999974E-6 : f32
    %14 = vector.broadcast %cst_4 : f32 to vector<32x1xf32>
    %15 = arith.addf %11, %14 : vector<32x1xf32>
    %16 = math.rsqrt %15 : vector<32x1xf32>
    %17 = vector.broadcast %16 : vector<32x1xf32> to vector<32x32xf32>
    %18 = arith.mulf %13, %17 : vector<32x32xf32>
    %c0_5 = arith.constant 0 : index
    %c0_6 = arith.constant 0 : index
    %19 = vector.load %arg2[%c0_5, %c0_6] : memref<1x32xf32, #tpu.memory_space<vmem>>, vector<1x32xf32>
    %20 = vector.broadcast %19 : vector<1x32xf32> to vector<32x32xf32>
    %21 = arith.mulf %18, %20 : vector<32x32xf32>
    %c0_7 = arith.constant 0 : index
    %c0_8 = arith.constant 0 : index
    %22 = vector.load %arg3[%c0_7, %c0_8] : memref<1x32xf32, #tpu.memory_space<vmem>>, vector<1x32xf32>
    %23 = vector.broadcast %22 : vector<1x32xf32> to vector<32x32xf32>
    %24 = arith.addf %21, %23 : vector<32x32xf32>
    %25 = arith.truncf %24 : vector<32x32xf32> to vector<32x32xbf16>
    %c0_9 = arith.constant 0 : index
    %c0_10 = arith.constant 0 : index
    %26 = vector.load %arg4[%c0_9, %c0_10] : memref<32x32xbf16, #tpu.memory_space<vmem>>, vector<32x32xbf16>
    tpu.vector_store %arg4[%c0_9, %c0_10], %25 {strides = array<i32>} : memref<32x32xbf16, #tpu.memory_space<vmem>>, vector<32x32xbf16>,
    return
  }
  func.func @transform_0(%arg0: i32) -> (i32, i32) {
    %c0_i32 = arith.constant 0 : i32
    %c0_i32_0 = arith.constant 0 : i32
    return %arg0, %c0_i32 : i32, i32
  }
  func.func @transform_1(%arg0: i32) -> (i32, i32) {
    %c0_i32 = arith.constant 0 : i32
    %c0_i32_0 = arith.constant 0 : i32
    %c0_i32_1 = arith.constant 0 : i32
    return %c0_i32, %c0_i32_0 : i32, i32
  }
  func.func @transform_2(%arg0: i32) -> (i32, i32) {
    %c0_i32 = arith.constant 0 : i32
    %c0_i32_0 = arith.constant 0 : i32
    %c0_i32_1 = arith.constant 0 : i32
    return %c0_i32, %c0_i32_0 : i32, i32
  }
  func.func @transform_3(%arg0: i32) -> (i32, i32) {
    %c0_i32 = arith.constant 0 : i32
    %c0_i32_0 = arith.constant 0 : i32
    return %arg0, %c0_i32 : i32, i32
  }
}

</mosaic_0001>

<llo_original>
// kernel: tpu_custom_call.1
$region0: #{tpu_custom_call.1}
  #allocation0 [shape = 'u32[]', space=smem, size = 0x4, offset = 0x4, fixed_abs, tag = 'smem constant byte address 0x4 - core index']
  #allocation1 [shape = 'u32[144,128]{1,0:T(1,128)}', space=vmem, size = 0x12000, scoped, tag = 'internal scratch']
  %s0 = inlined_call_operand.hbm [shape: f32[32,32], index: 0, kind: input, shape index: {}]
  %s1 = inlined_call_operand.vmem [shape: f32[1,32], index: 1, kind: input, shape index: {}]
  %s2 = inlined_call_operand.vmem [shape: f32[1,32], index: 2, kind: input, shape index: {}]
  %s3 = inlined_call_operand.hbm [shape: bf16[32,32], index: 3, kind: output, shape index: {}]
  %s4 = sld [smem:[#allocation0]]
  $region26: #{tpu_custom_call.1} parent=0
    _
  %s6 = ssub.s32 1, %s4
  %s7 = scalar_select 0, %s6, %s4
  $region1: #{tpu_custom_call.1} parent=0
    #allocation2 [shape = 'u8[16384]{0}', space=vmem, size = 0x4000, scoped, tag = 'input window, operand 0, single buffered']
    #allocation3 [shape = 's32[1]{0}', space=sflag, size = 0x4, scoped, tag = 'scoped memory for tpu_custom_call.1']
    #allocation4 [shape = 's32[1]{0}', space=sflag, size = 0x4, scoped, tag = 'scoped memory for tpu_custom_call.1']
    #allocation5 [shape = 'u8[8192]{0}', space=vmem, size = 0x2000, scoped, tag = 'output window, operand 0, single buffered']
    %8 = vsyncpa [#allocation3], 0
    %9 = vsyncpa [#allocation4], 0
    // Predicated region
    $region2: #{tpu_custom_call.1} parent=1 // pred_check
      _
    $region3: #{tpu_custom_call.1} parent=1 // pred_check_branch
      %11 = sbr.rel (0) target = $region5
    $region4: #{tpu_custom_call.1} parent=1 // pred_region
      %s13 = ssub.s32 512, 512
      %14 = vsyncadd [#allocation3], %s13
      %s15 = sshll.u32 [#allocation2], 4
      %s16 = int_to_ptr.vmem [resolvable:$true] %s15
      %21 = dma.hbm_to_vmem [thread:$0]  %s0, 512, %s16, [#allocation3], 128, 128, 8
    $region5: #{tpu_custom_call.1} parent=1 // pred_fallthru
      _
    // Predicated region
    $region6: #{tpu_custom_call.1} parent=1 // pred_check
      _
    $region7: #{tpu_custom_call.1} parent=1 // pred_check_branch
      %23 = sbr.rel (0) target = $region9
    $region8: #{tpu_custom_call.1} parent=1 // pred_region
      _
    $region9: #{tpu_custom_call.1} parent=1 // pred_fallthru
      _
    // Predicated region
    $region10: #{tpu_custom_call.1} parent=1 // pred_check
      _
    $region11: #{tpu_custom_call.1} parent=1 // pred_check_branch
      %25 = sbr.rel (0) target = $region13
    $region12: #{tpu_custom_call.1} parent=1 // pred_region
      _
    $region13: #{tpu_custom_call.1} parent=1 // pred_fallthru
      _
    // Predicated region
    $region14: #{tpu_custom_call.1} parent=1 // pred_check
      _
    $region15: #{tpu_custom_call.1} parent=1 // pred_check_branch
      %27 = sbr.rel (0) target = $region17
    $region16: #{tpu_custom_call.1} parent=1 // pred_region
      %28 = dma.done [#allocation3], 512
    $region17: #{tpu_custom_call.1} parent=1 // pred_fallthru
      _
    %v29 = vld [vmem:[#allocation2] sm:$0xff]
    %v30 = vld [vmem:[#allocation2 + $0x8] sm:$0xff]
    %v31 = vld [vmem:[#allocation2 + $0x10] sm:$0xff]
    %v32 = vld [vmem:[#allocation2 + $0x18] sm:$0xff]
    %vm33 = vcmask 261120
    %v34 = vsel %vm33, %v29, 0.0
    %35 = vadd.xlane.f32.xlu0 %v34
    %v36 = vpop.xlane.xlu0 %35
    %v37 = vsel %vm33, %v30, 0.0
    %38 = vadd.xlane.f32.xlu0 %v37
    %v39 = vpop.xlane.xlu0 %38
    %v40 = vsel %vm33, %v31, 0.0
    %41 = vadd.xlane.f32.xlu0 %v40
    %v42 = vpop.xlane.xlu0 %41
    %v43 = vsel %vm33, %v32, 0.0
    %44 = vadd.xlane.f32.xlu0 %v43
    %v45 = vpop.xlane.xlu0 %44
    %v46 = vrcp.pop 32.0
    %v47 = vmul.f32 %v36, %v46
    %v48 = vmul.f32 %v39, %v46
    %v49 = vmul.f32 %v42, %v46
    %v50 = vmul.f32 %v45, %v46
    %v51 = vsub.f32 %v29, %v47
    %v52 = vsub.f32 %v30, %v48
    %v53 = vsub.f32 %v31, %v49
    %v54 = vsub.f32 %v32, %v50
    %v55 = vmul.f32 %v51, %v51
    %v56 = vmul.f32 %v52, %v52
    %v57 = vmul.f32 %v53, %v53
    %v58 = vmul.f32 %v54, %v54
    %v59 = vsel %vm33, %v55, 0.0
    %60 = vadd.xlane.f32.xlu0 %v59
    %v61 = vpop.xlane.xlu0 %60
    %v62 = vsel %vm33, %v56, 0.0
    %63 = vadd.xlane.f32.xlu0 %v62
    %v64 = vpop.xlane.xlu0 %63
    %v65 = vsel %vm33, %v57, 0.0
    %66 = vadd.xlane.f32.xlu0 %v65
    %v67 = vpop.xlane.xlu0 %66
    %v68 = vsel %vm33, %v58, 0.0
    %69 = vadd.xlane.f32.xlu0 %v68
    %v70 = vpop.xlane.xlu0 %69
    %v71 = vmul.f32 %v61, %v46
    %v72 = vmul.f32 %v64, %v46
    %v73 = vmul.f32 %v67, %v46
    %v74 = vmul.f32 %v70, %v46
    %v75 = vadd.f32 %v71, 1e-05
    %v76 = vadd.f32 %v72, 1e-05
    %v77 = vadd.f32 %v73, 1e-05
    %v78 = vadd.f32 %v74, 1e-05
    %v79 = vrsqrt.pop %v75
    %v80 = vrsqrt.pop %v76
    %v81 = vrsqrt.pop %v77
    %v82 = vrsqrt.pop %v78
    %v83 = vmul.f32 %v51, %v79
    %v84 = vmul.f32 %v52, %v80
    %v85 = vmul.f32 %v53, %v81
    %v86 = vmul.f32 %v54, %v82
    %v87 = vld [vmem:[%s1] sm:$0x1]
    %v89 = vlaneseq
    %v90 = vshrl.u32 %v89, 7
    %v91 = vsub.s32 0, %v90
    %v92 = vrot.slane %v87, %v91
    %v94 = vmul.f32 %v83, %v92
    %v95 = vmul.f32 %v84, %v92
    %v96 = vmul.f32 %v85, %v92
    %v97 = vmul.f32 %v86, %v92
    %v98 = vld [vmem:[%s2] sm:$0x1]
    %v100 = vlaneseq
    %v101 = vshrl.u32 %v100, 7
    %v102 = vsub.s32 0, %v101
    %v103 = vrot.slane %v98, %v102
    %v105 = vadd.f32 %v94, %v103
    %v106 = vadd.f32 %v95, %v103
    %v107 = vadd.f32 %v96, %v103
    %v108 = vadd.f32 %v97, %v103
    %v109 = vpack.c.bf16 %v106, %v105
    %v110 = vpack.c.bf16 %v108, %v107
    %v113 = vunpack.c.l.b16 %v109
    %v114 = vunpack.c.h.b16 %v109
    %v115 = vunpack.c.l.b16 %v110
    %v116 = vunpack.c.h.b16 %v110
    %v117 = vpack.c.b16 %v113, %v113
    %v118 = vpack.c.b16 %v114, %v114
    %v119 = vpack.c.b16 %v115, %v115
    %v120 = vpack.c.b16 %v116, %v116
    %vm125 = vcmask 257024
    %126 = vst.msk [vmem:[#allocation5] sm:$0xf] %vm125, %v117
    %127 = vst.msk [vmem:[#allocation5 + $0x4] sm:$0xf] %vm125, %v118
    %128 = vst.msk [vmem:[#allocation5 + $0x8] sm:$0xf] %vm125, %v119
    %129 = vst.msk [vmem:[#allocation5 + $0xc] sm:$0xf] %vm125, %v120
    // Predicated region
    $region18: #{tpu_custom_call.1} parent=1 // pred_check
      _
    $region19: #{tpu_custom_call.1} parent=1 // pred_check_branch
      %131 = sbr.rel (0) target = $region21
    $region20: #{tpu_custom_call.1} parent=1 // pred_region
      %s133 = ssub.s32 256, 256
      %134 = vsyncadd [#allocation4], %s133
      %s135 = sshll.u32 [#allocation5], 4
      %s136 = int_to_ptr.vmem [resolvable:$true] %s135
      %141 = dma.vmem_to_hbm [thread:$0]  %s136, 256, %s3, [#allocation4], 64, 64, 4
    $region21: #{tpu_custom_call.1} parent=1 // pred_fallthru
      _
    // Predicated region
    $region22: #{tpu_custom_call.1} parent=1 // pred_check
      _
    $region23: #{tpu_custom_call.1} parent=1 // pred_check_branch
      %143 = sbr.rel (0) target = $region25
    $region24: #{tpu_custom_call.1} parent=1 // pred_region
      %144 = dma.done [#allocation4], 256
    $region25: #{tpu_custom_call.1} parent=1 // pred_fallthru
      _
    %145 = vsyncpa [#allocation3], 1
    %146 = vsyncpa [#allocation4], 1

</llo_original>
